<compile_context>
chip_gen: v6e
topology: v6e:2x2x1
jax: 0.10.0
libtpu: 0.0.40
codegen_flags: <defaults>
</compile_context>

<pallas_src>
from functools import partial

import jax
import jax.numpy as jnp
from jax.experimental import pallas as pl
from jax.experimental.pallas import tpu as pltpu


def _cdiv(a, b):
    return -(-a // b)


def _round_up(a, b):
    return _cdiv(a, b) * b


def _pow_static(x, gamma):
    """x ** gamma for x >= 0, special-casing cheap static exponents."""
    if gamma == 1.0:
        return x
    if gamma == 2.0:
        return x * x
    if gamma == 0.5:
        return jnp.sqrt(x)
    if gamma == 1.5:
        return x * jnp.sqrt(x)          # 1 EUP sqrt + 1 VPU mul (vs exp+log)
    return jnp.power(x, gamma)          # general fallback (exp/log on EUP)


def _inv_pow_static(x, gamma):
    """x ** (-gamma) for x > 0 (only applied to tiny (tm, 1) row sums)."""
    if gamma == 1.0:
        return pl.reciprocal(x, approx=True)
    if gamma == 2.0:
        r = pl.reciprocal(x, approx=True)
        return r * r
    if gamma == 0.5:
        return jax.lax.rsqrt(x)
    if gamma == 1.5:
        return pl.reciprocal(x, approx=True) * jax.lax.rsqrt(x)
    return jnp.power(x, -gamma)


def _focal_triplet_kernel(im_blk_ref, s_blk_ref, s_t_ref, im_t_ref, d_ref,
                          out_ref, *, tm, n_valid, n_pad, margin, inv_temp,
                          gamma, score_bound):
    d_row = d_ref[...]                                   # (1, n_pad) f32
    masked = n_pad != n_valid                            # static Python bool
    if masked:
        col_ids = jax.lax.broadcasted_iota(jnp.int32, (1, n_pad), 1)
        col_valid = col_ids < n_valid

    def half_term(a_blk_ref, b_t_ref):
        # scores[r, c] = a_blk[r] . b[c]; operands stay bf16 (MXU-native rate),
        # f32 accumulation.  The RHS was pre-transposed to (D, N) in the
        # wrapper so this is a plain (M,K)x(K,N) matmul, no in-kernel vxpose.
        scores = jnp.dot(a_blk_ref[...], b_t_ref[...],
                         preferred_element_type=jnp.float32)   # (tm, n_pad)
        # margin + (scores - diag) clamped at 0; the original
        # "- diag_embed(diag(cost))" term is exactly zero and is dropped.
        cost = jnp.maximum(scores - d_row + margin, 0.0)
        z = cost * inv_temp
        if masked:
            z = jnp.where(col_valid, z, -1e30)    # padded columns -> exp == 0
        if score_bound is None:
            z = z - jnp.max(z, axis=-1, keepdims=True)         # exact softmax
        else:
            # |scores| <= bound  =>  cost <= margin + 2*bound: a constant shift
            # replaces the per-row XLU max-reduce + broadcast subtract.
            z = z - (margin + 2.0 * score_bound) * inv_temp
        ez = jnp.exp(z)
        # sum_c p^g * cost == (sum_c ez^g * cost) * (sum_c ez)^(-g): never
        # materialize p = ez / sum(ez) as a (tm, n_pad) array.
        w_sum = jnp.sum(_pow_static(ez, gamma) * cost, axis=-1, keepdims=True)
        s_sum = jnp.sum(ez, axis=-1, keepdims=True)
        return w_sum * _inv_pow_static(s_sum, gamma)           # (tm, 1)

    # Term 1: softmax(cost_im / T, dim=-1)        -> rows of im vs all of s.
    # Term 2: softmax(cost_s  / T, dim=-2) summed -> rows of s vs all of im
    #         (transposed cost_s; same column-indexed diagonal d_row).
    row_vals = half_term(im_blk_ref, s_t_ref) + half_term(s_blk_ref, im_t_ref)
    if masked:
        row0 = pl.program_id(0) * tm
        row_ids = row0 + jax.lax.broadcasted_iota(jnp.int32, (tm, 1), 0)
        row_vals = jnp.where(row_ids < n_valid, row_vals, 0.0)
    out_ref[0, 0] = jnp.sum(row_vals)


def _choose_block_rows(n, cap):
    """Multiple-of-8 row block, >= 2 blocks whenever n > 8 (v7x megacore)."""
    assert cap >= 8 and cap % 8 == 0, cap
    if n <= 8:
        return 8
    num_blocks = max(2, _cdiv(n, cap))        # >= 2 so both v7x TCs get work
    return min(cap, max(8, _round_up(_cdiv(n, num_blocks), 8)))


_BUFFERED1_OK = None   # cache: does this jax/Mosaic build accept pl.Buffered(1)?


def focal_triplet(im, s, *, margin=0.2, temperature=0.1, gamma=1.5,
                  block_rows=None, max_block_rows=256, score_bound=None,
                  matmul_dtype=jnp.bfloat16):
    """Pallas implementation of FocalTriplet.forward(im, s) -> scalar loss.

    score_bound: optional bound B with |im_i . s_j| <= B (e.g. 1.0 for
      L2-normalized embeddings). When set, the in-kernel softmax uses a
      constant shift instead of a per-row max reduction.
    max_block_rows: 256 by default (v6e/v7x MXU tile); prefer 128 on v5e.
    """
    assert im.ndim == 2 and s.ndim == 2 and im.shape == s.shape, (im.shape, s.shape)
    n, d = im.shape
    tm = int(block_rows) if block_rows is not None else _choose_block_rows(n, max_block_rows)
    assert tm % 8 == 0, tm
    num_blocks = _cdiv(n, tm)
    n_pad = tm * num_blocks
    if score_bound is not None:
        assert (margin + 2.0 * score_bound) / temperature < 80.0, \
            "constant-shift softmax would overflow exp(); use score_bound=None"

    # MXU operands in bf16; f32 accumulation happens inside the kernel's dot.
    im_mx = im.astype(matmul_dtype)
    s_mx = s.astype(matmul_dtype)
    # Diagonal d_j = im_j . s_j hoisted out of the kernel: computed once here,
    # in f32, from the same rounded operands the MXU sees.
    d_vec = jnp.sum(im_mx.astype(jnp.float32) * s_mx.astype(jnp.float32),
                    axis=-1)[None, :]                               # (1, n)
    if n_pad != n:
        pad = n_pad - n
        im_mx = jnp.pad(im_mx, ((0, pad), (0, 0)))
        s_mx = jnp.pad(s_mx, ((0, pad), (0, 0)))
        d_vec = jnp.pad(d_vec, ((0, 0), (0, pad)))
    # One-time wrapper transposes: in-kernel matmuls then contract on the RHS
    # sublane axis natively (no per-step relayout of an (N, D) operand).
    s_t = s_mx.T                                                    # (d, n_pad)
    im_t = im_mx.T                                                  # (d, n_pad)

    kernel = partial(_focal_triplet_kernel, tm=tm, n_valid=n, n_pad=n_pad,
                     margin=float(margin), inv_temp=float(1.0 / temperature),
                     gamma=float(gamma),
                     score_bound=None if score_bound is None else float(score_bound))

    # VMEM budget: resident transposed operands + d_row (single-buffered),
    # double-buffered (tm, d) row blocks, ~6 live (tm, n_pad) f32 temporaries,
    # then 2x headroom (also covers the double-buffered fallback below).
    isz = jnp.dtype(matmul_dtype).itemsize
    est = (2 * d * n_pad * isz + 4 * n_pad          # resident s_t, im_t, d_vec
           + 2 * 2 * tm * d * isz                   # pipelined row blocks
           + 6 * tm * n_pad * 4)                    # f32 temporaries
    vmem_limit = int(min(max(2 * est, 32 * 1024 * 1024), 128 * 1024 * 1024))

    def run(single_buffer_resident):
        res_kw = {"pipeline_mode": pl.Buffered(1)} if single_buffer_resident else {}
        return pl.pallas_call(
            kernel,
            out_shape=jax.ShapeDtypeStruct((num_blocks, 1), jnp.float32),
            grid=(num_blocks,),
            in_specs=[
                # Per-step (tm, d) row blocks of im / s: auto-pipelined DMA.
                pl.BlockSpec((tm, d), lambda i: (i, 0)),
                pl.BlockSpec((tm, d), lambda i: (i, 0)),
                # Full transposed operands + diagonal stay VMEM-resident
                # (constant index map); single-buffered to halve their VMEM.
                pl.BlockSpec((d, n_pad), lambda i: (0, 0), **res_kw),
                pl.BlockSpec((d, n_pad), lambda i: (0, 0), **res_kw),
                pl.BlockSpec((1, n_pad), lambda i: (0, 0), **res_kw),
            ],
            # One scalar partial per row block in SMEM -> the grid axis is
            # safely "parallel" (both TCs on v7x); final sum + /N in wrapper.
            out_specs=pl.BlockSpec((1, 1), lambda i: (i, 0),
                                   memory_space=pltpu.SMEM),
            compiler_params=pltpu.CompilerParams(
                dimension_semantics=("parallel",),
                vmem_limit_bytes=vmem_limit),
        )(im_mx, s_mx, s_t, im_t, d_vec)

    global _BUFFERED1_OK
    if _BUFFERED1_OK is None:
        try:
            partials = run(True)
            _BUFFERED1_OK = True
        except Exception:
            # pipeline_mode=pl.Buffered(1) rejected by this jax/Mosaic build:
            # fall back to default double buffering of the resident inputs.
            _BUFFERED1_OK = False
            partials = run(False)
    else:
        partials = run(_BUFFERED1_OK)
    return jnp.sum(partials) * jnp.float32(1.0 / n)


def focal_triplet_ref(im, s, *, margin=0.2, temperature=0.1, gamma=1.5):
    """Pure-JAX reference mirroring the PyTorch forward exactly."""
    scores = im @ s.T
    n = im.shape[0]
    diag = jnp.diag(scores).reshape(n, 1)
    cost_s = scores - diag                      # broadcast column vector (d1)
    cost_im = scores - diag.T                   # broadcast row vector    (d2)
    cost_s = jnp.maximum(margin + cost_s - jnp.diag(jnp.diag(cost_s)), 0.0)
    cost_im = jnp.maximum(margin + cost_im - jnp.diag(jnp.diag(cost_im)), 0.0)
    scores_im = jax.nn.softmax(cost_im / temperature, axis=-1)
    scores_sen = jax.nn.softmax(cost_s / temperature, axis=-2)
    return jnp.sum(scores_im ** gamma * cost_im
                   + scores_sen ** gamma * cost_s) / n


if __name__ == "__main__":
    key = jax.random.PRNGKey(0)

    def make_inputs(n, d, k):
        k_im, k_s = jax.random.split(k)
        im = jax.random.normal(k_im, (n, d), dtype=jnp.float32)
        s = jax.random.normal(k_s, (n, d), dtype=jnp.float32)
        # L2-normalize like typical retrieval embeddings (scores in [-1, 1]).
        im = im / jnp.linalg.norm(im, axis=-1, keepdims=True)
        s = s / jnp.linalg.norm(s, axis=-1, keepdims=True)
        return im, s

    def check(out, im, s, tag):
        ref_exact = focal_triplet_ref(im, s)
        ref_rounded = focal_triplet_ref(
            im.astype(jnp.bfloat16).astype(jnp.float32),
            s.astype(jnp.bfloat16).astype(jnp.float32))
        # Tight vs a bf16-rounded-input reference (isolates kernel math);
        # looser vs the exact f32 reference (covers bf16 MXU operand rounding).
        assert jnp.allclose(out, ref_rounded, rtol=5e-3, atol=5e-3), (tag, out, ref_rounded)
        assert jnp.allclose(out, ref_exact, rtol=2e-2, atol=2e-2), (tag, out, ref_exact)

    k1, k2 = jax.random.split(key)

    # Case 1: N=8, D=32 -- exact per-row-max softmax path, bf16 MXU operands.
    im, s = make_inputs(8, 32, k1)
    out = jax.block_until_ready(focal_triplet(im, s))
    check(out, im, s, "n8")

    # Case 2: ragged N=12 (pads to 16, two row blocks -> megacore-friendly,
    # exercises the column/row masking path) with the constant-shift softmax
    # (score_bound=1.0 is valid since embeddings are L2-normalized).
    im, s = make_inputs(12, 32, k2)
    out = jax.block_until_ready(focal_triplet(im, s, score_bound=1.0))
    check(out, im, s, "n12_ragged")

    print("KERNEL_OK")
</pallas_src>

<mosaic_0001>
module attributes {stable_mosaic.version = 11 : i64} {
  func.func @_focal_triplet_kernel(%arg0: i32, %arg1: memref<8x32xbf16, #tpu.memory_space<vmem>>, %arg2: memref<8x32xbf16, #tpu.memory_space<vmem>>, %arg3: memref<32x8xbf16, #tpu.memory_space<vmem>>, %arg4: memref<32x8xbf16, #tpu.memory_space<vmem>>, %arg5: memref<1x8xf32, #tpu.memory_space<vmem>>, %arg6: memref<1x1xf32, #tpu.memory_space<smem>>) attributes {dimension_semantics = [#tpu.dimension_semantics<parallel>], iteration_bounds = array<i64: 1>, scalar_prefetch = 0 : i64, scratch_operands = 0 : i64, tpu.core_type = #tpu.core_type<tc>, window_params = [{transform_indices = @transform_0, window_bounds = array<i64: 8, 32>}, {transform_indices = @transform_1, window_bounds = array<i64: 8, 32>}, {pipeline_mode = #tpu.pipeline_mode<synchronous>, transform_indices = @transform_2, window_bounds = array<i64: 32, 8>}, {pipeline_mode = #tpu.pipeline_mode<synchronous>, transform_indices = @transform_3, window_bounds = array<i64: 32, 8>}, {pipeline_mode = #tpu.pipeline_mode<synchronous>, transform_indices = @transform_4, window_bounds = array<i64: 1, 8>}, {transform_indices = @transform_5, window_bounds = array<i64: 1, 1>}]} {
    %c0 = arith.constant 0 : index
    %c0_0 = arith.constant 0 : index
    %0 = vector.load %arg5[%c0, %c0_0] : memref<1x8xf32, #tpu.memory_space<vmem>>, vector<1x8xf32>
    %c0_1 = arith.constant 0 : index
    %c0_2 = arith.constant 0 : index
    %1 = vector.load %arg1[%c0_1, %c0_2] : memref<8x32xbf16, #tpu.memory_space<vmem>>, vector<8x32xbf16>
    %c0_3 = arith.constant 0 : index
    %c0_4 = arith.constant 0 : index
    %2 = vector.load %arg3[%c0_3, %c0_4] : memref<32x8xbf16, #tpu.memory_space<vmem>>, vector<32x8xbf16>
    %cst = arith.constant dense<0.000000e+00> : vector<8x8xf32>
    %3 = tpu.matmul %1, %2, %cst {dimension_numbers = #tpu.dot_dimension_numbers<[1], [0], [0], [1], [0, 0, 1, 1], [], []>} : vector<8x32xbf16>, vector<32x8xbf16>, vector<8x8xf32> -> vector<8x8xf32>
    %4 = vector.broadcast %0 : vector<1x8xf32> to vector<8x8xf32>
    %5 = arith.subf %3, %4 : vector<8x8xf32>
    %cst_5 = arith.constant 2.000000e-01 : f32
    %6 = vector.broadcast %cst_5 : f32 to vector<8x8xf32>
    %7 = arith.addf %5, %6 : vector<8x8xf32>
    %cst_6 = arith.constant 0.000000e+00 : f32
    %8 = vector.broadcast %cst_6 : f32 to vector<8x8xf32>
    %9 = arith.maximumf %7, %8 : vector<8x8xf32>
    %cst_7 = arith.constant 1.000000e+01 : f32
    %10 = vector.broadcast %cst_7 : f32 to vector<8x8xf32>
    %11 = arith.mulf %9, %10 : vector<8x8xf32>
    %cst_8 = arith.constant dense<0xFF800000> : vector<8xf32>
    %12 = vector.multi_reduction <maximumf>, %11, %cst_8 [1] : vector<8x8xf32> to vector<8xf32>
    %13 = vector.shape_cast %12 : vector<8xf32> to vector<8x1xf32>
    %14 = vector.broadcast %13 : vector<8x1xf32> to vector<8x8xf32>
    %15 = arith.subf %11, %14 : vector<8x8xf32>
    %16 = math.exp %15 : vector<8x8xf32>
    %17 = math.sqrt %16 : vector<8x8xf32>
    %18 = arith.mulf %16, %17 : vector<8x8xf32>
    %19 = arith.mulf %18, %9 : vector<8x8xf32>
    %cst_9 = arith.constant dense<0.000000e+00> : vector<8xf32>
    %20 = vector.multi_reduction <add>, %19, %cst_9 [1] : vector<8x8xf32> to vector<8xf32>
    %21 = vector.shape_cast %20 : vector<8xf32> to vector<8x1xf32>
    %cst_10 = arith.constant dense<0.000000e+00> : vector<8xf32>
    %22 = vector.multi_reduction <add>, %16, %cst_10 [1] : vector<8x8xf32> to vector<8xf32>
    %23 = vector.shape_cast %22 : vector<8xf32> to vector<8x1xf32>
    %24 = tpu.reciprocal %23 {approx = true} : vector<8x1xf32> -> vector<8x1xf32>
    %25 = math.rsqrt %23 : vector<8x1xf32>
    %26 = arith.mulf %24, %25 : vector<8x1xf32>
    %27 = arith.mulf %21, %26 : vector<8x1xf32>
    %c0_11 = arith.constant 0 : index
    %c0_12 = arith.constant 0 : index
    %28 = vector.load %arg2[%c0_11, %c0_12] : memref<8x32xbf16, #tpu.memory_space<vmem>>, vector<8x32xbf16>
    %c0_13 = arith.constant 0 : index
    %c0_14 = arith.constant 0 : index
    %29 = vector.load %arg4[%c0_13, %c0_14] : memref<32x8xbf16, #tpu.memory_space<vmem>>, vector<32x8xbf16>
    %cst_15 = arith.constant dense<0.000000e+00> : vector<8x8xf32>
    %30 = tpu.matmul %28, %29, %cst_15 {dimension_numbers = #tpu.dot_dimension_numbers<[1], [0], [0], [1], [0, 0, 1, 1], [], []>} : vector<8x32xbf16>, vector<32x8xbf16>, vector<8x8xf32> -> vector<8x8xf32>
    %31 = vector.broadcast %0 : vector<1x8xf32> to vector<8x8xf32>
    %32 = arith.subf %30, %31 : vector<8x8xf32>
    %cst_16 = arith.constant 2.000000e-01 : f32
    %33 = vector.broadcast %cst_16 : f32 to vector<8x8xf32>
    %34 = arith.addf %32, %33 : vector<8x8xf32>
    %cst_17 = arith.constant 0.000000e+00 : f32
    %35 = vector.broadcast %cst_17 : f32 to vector<8x8xf32>
    %36 = arith.maximumf %34, %35 : vector<8x8xf32>
    %cst_18 = arith.constant 1.000000e+01 : f32
    %37 = vector.broadcast %cst_18 : f32 to vector<8x8xf32>
    %38 = arith.mulf %36, %37 : vector<8x8xf32>
    %cst_19 = arith.constant dense<0xFF800000> : vector<8xf32>
    %39 = vector.multi_reduction <maximumf>, %38, %cst_19 [1] : vector<8x8xf32> to vector<8xf32>
    %40 = vector.shape_cast %39 : vector<8xf32> to vector<8x1xf32>
    %41 = vector.broadcast %40 : vector<8x1xf32> to vector<8x8xf32>
    %42 = arith.subf %38, %41 : vector<8x8xf32>
    %43 = math.exp %42 : vector<8x8xf32>
    %44 = math.sqrt %43 : vector<8x8xf32>
    %45 = arith.mulf %43, %44 : vector<8x8xf32>
    %46 = arith.mulf %45, %36 : vector<8x8xf32>
    %cst_20 = arith.constant dense<0.000000e+00> : vector<8xf32>
    %47 = vector.multi_reduction <add>, %46, %cst_20 [1] : vector<8x8xf32> to vector<8xf32>
    %48 = vector.shape_cast %47 : vector<8xf32> to vector<8x1xf32>
    %cst_21 = arith.constant dense<0.000000e+00> : vector<8xf32>
    %49 = vector.multi_reduction <add>, %43, %cst_21 [1] : vector<8x8xf32> to vector<8xf32>
    %50 = vector.shape_cast %49 : vector<8xf32> to vector<8x1xf32>
    %51 = tpu.reciprocal %50 {approx = true} : vector<8x1xf32> -> vector<8x1xf32>
    %52 = math.rsqrt %50 : vector<8x1xf32>
    %53 = arith.mulf %51, %52 : vector<8x1xf32>
    %54 = arith.mulf %48, %53 : vector<8x1xf32>
    %55 = arith.addf %27, %54 : vector<8x1xf32>
    %56 = vector.shape_cast %55 : vector<8x1xf32> to vector<1x8x1xf32>
    %cst_22 = arith.constant dense<0.000000e+00> : vector<1xf32>
    %57 = vector.multi_reduction <add>, %56, %cst_22 [1, 2] : vector<1x8x1xf32> to vector<1xf32>
    %58 = vector.shape_cast %57 : vector<1xf32> to vector<1x1x1xf32>
    %59 = vector.extract %58[0, 0, 0] : f32 from vector<1x1x1xf32>
    %c0_23 = arith.constant 0 : index
    %c0_24 = arith.constant 0 : index
    %60 = memref.load %arg6[%c0_23, %c0_24] : memref<1x1xf32, #tpu.memory_space<smem>>
    memref.store %59, %arg6[%c0_23, %c0_24] : memref<1x1xf32, #tpu.memory_space<smem>>
    return
  }
  func.func @transform_0(%arg0: i32) -> (i32, i32) {
    %c0_i32 = arith.constant 0 : i32
    %c0_i32_0 = arith.constant 0 : i32
    return %arg0, %c0_i32 : i32, i32
  }
  func.func @transform_1(%arg0: i32) -> (i32, i32) {
    %c0_i32 = arith.constant 0 : i32
    %c0_i32_0 = arith.constant 0 : i32
    return %arg0, %c0_i32 : i32, i32
  }
  func.func @transform_2(%arg0: i32) -> (i32, i32) {
    %c0_i32 = arith.constant 0 : i32
    %c0_i32_0 = arith.constant 0 : i32
    %c0_i32_1 = arith.constant 0 : i32
    return %c0_i32, %c0_i32_0 : i32, i32
  }
  func.func @transform_3(%arg0: i32) -> (i32, i32) {
    %c0_i32 = arith.constant 0 : i32
    %c0_i32_0 = arith.constant 0 : i32
    %c0_i32_1 = arith.constant 0 : i32
    return %c0_i32, %c0_i32_0 : i32, i32
  }
  func.func @transform_4(%arg0: i32) -> (i32, i32) {
    %c0_i32 = arith.constant 0 : i32
    %c0_i32_0 = arith.constant 0 : i32
    %c0_i32_1 = arith.constant 0 : i32
    return %c0_i32, %c0_i32_0 : i32, i32
  }
  func.func @transform_5(%arg0: i32) -> (i32, i32) {
    %c0_i32 = arith.constant 0 : i32
    %c0_i32_0 = arith.constant 0 : i32
    return %arg0, %c0_i32 : i32, i32
  }
}

module attributes {stable_mosaic.version = 11 : i64} {
  func.func @_focal_triplet_kernel(%arg0: i32, %arg1: memref<8x32xbf16, #tpu.memory_space<vmem>>, %arg2: memref<8x32xbf16, #tpu.memory_space<vmem>>, %arg3: memref<32x8xbf16, #tpu.memory_space<vmem>>, %arg4: memref<32x8xbf16, #tpu.memory_space<vmem>>, %arg5: memref<1x8xf32, #tpu.memory_space<vmem>>, %arg6: memref<1x1xf32, #tpu.memory_space<smem>>) attributes {dimension_semantics = [#tpu.dimension_semantics<parallel>], iteration_bounds = array<i64: 1>, scalar_prefetch = 0 : i64, scratch_operands = 0 : i64, tpu.core_type = #tpu.core_type<tc>, window_params = [{transform_indices = @transform_0, window_bounds = array<i64: 8, 32>}, {transform_indices = @transform_1, window_bounds = array<i64: 8, 32>}, {pipeline_mode = #tpu.pipeline_mode<synchronous>, transform_indices = @transform_2, window_bounds = array<i64: 32, 8>}, {pipeline_mode = #tpu.pipeline_mode<synchronous>, transform_indices = @transform_3, window_bounds = array<i64: 32, 8>}, {pipeline_mode = #tpu.pipeline_mode<synchronous>, transform_indices = @transform_4, window_bounds = array<i64: 1, 8>}, {transform_indices = @transform_5, window_bounds = array<i64: 1, 1>}]} {
    %c0 = arith.constant 0 : index
    %c0_0 = arith.constant 0 : index
    %0 = vector.load %arg5[%c0, %c0_0] : memref<1x8xf32, #tpu.memory_space<vmem>>, vector<1x8xf32>
    %c0_1 = arith.constant 0 : index
    %c0_2 = arith.constant 0 : index
    %1 = vector.load %arg1[%c0_1, %c0_2] : memref<8x32xbf16, #tpu.memory_space<vmem>>, vector<8x32xbf16>
    %c0_3 = arith.constant 0 : index
    %c0_4 = arith.constant 0 : index
    %2 = vector.load %arg3[%c0_3, %c0_4] : memref<32x8xbf16, #tpu.memory_space<vmem>>, vector<32x8xbf16>
    %cst = arith.constant dense<0.000000e+00> : vector<8x8xf32>
    %3 = tpu.matmul %1, %2, %cst {dimension_numbers = #tpu.dot_dimension_numbers<[1], [0], [0], [1], [0, 0, 1, 1], [], []>} : vector<8x32xbf16>, vector<32x8xbf16>, vector<8x8xf32> -> vector<8x8xf32>
    %4 = vector.broadcast %0 : vector<1x8xf32> to vector<8x8xf32>
    %5 = arith.subf %3, %4 : vector<8x8xf32>
    %cst_5 = arith.constant 2.000000e-01 : f32
    %6 = vector.broadcast %cst_5 : f32 to vector<8x8xf32>
    %7 = arith.addf %5, %6 : vector<8x8xf32>
    %cst_6 = arith.constant 0.000000e+00 : f32
    %8 = vector.broadcast %cst_6 : f32 to vector<8x8xf32>
    %9 = arith.maximumf %7, %8 : vector<8x8xf32>
    %cst_7 = arith.constant 1.000000e+01 : f32
    %10 = vector.broadcast %cst_7 : f32 to vector<8x8xf32>
    %11 = arith.mulf %9, %10 : vector<8x8xf32>
    %cst_8 = arith.constant dense<0xFF800000> : vector<8xf32>
    %12 = vector.multi_reduction <maximumf>, %11, %cst_8 [1] : vector<8x8xf32> to vector<8xf32>
    %13 = vector.shape_cast %12 : vector<8xf32> to vector<8x1xf32>
    %14 = vector.broadcast %13 : vector<8x1xf32> to vector<8x8xf32>
    %15 = arith.subf %11, %14 : vector<8x8xf32>
    %16 = math.exp %15 : vector<8x8xf32>
    %17 = math.sqrt %16 : vector<8x8xf32>
    %18 = arith.mulf %16, %17 : vector<8x8xf32>
    %19 = arith.mulf %18, %9 : vector<8x8xf32>
    %cst_9 = arith.constant dense<0.000000e+00> : vector<8xf32>
    %20 = vector.multi_reduction <add>, %19, %cst_9 [1] : vector<8x8xf32> to vector<8xf32>
    %21 = vector.shape_cast %20 : vector<8xf32> to vector<8x1xf32>
    %cst_10 = arith.constant dense<0.000000e+00> : vector<8xf32>
    %22 = vector.multi_reduction <add>, %16, %cst_10 [1] : vector<8x8xf32> to vector<8xf32>
    %23 = vector.shape_cast %22 : vector<8xf32> to vector<8x1xf32>
    %24 = tpu.reciprocal %23 {approx = true} : vector<8x1xf32> -> vector<8x1xf32>
    %25 = math.rsqrt %23 : vector<8x1xf32>
    %26 = arith.mulf %24, %25 : vector<8x1xf32>
    %27 = arith.mulf %21, %26 : vector<8x1xf32>
    %c0_11 = arith.constant 0 : index
    %c0_12 = arith.constant 0 : index
    %28 = vector.load %arg2[%c0_11, %c0_12] : memref<8x32xbf16, #tpu.memory_space<vmem>>, vector<8x32xbf16>
    %c0_13 = arith.constant 0 : index
    %c0_14 = arith.constant 0 : index
    %29 = vector.load %arg4[%c0_13, %c0_14] : memref<32x8xbf16, #tpu.memory_space<vmem>>, vector<32x8xbf16>
    %cst_15 = arith.constant dense<0.000000e+00> : vector<8x8xf32>
    %30 = tpu.matmul %28, %29, %cst_15 {dimension_numbers = #tpu.dot_dimension_numbers<[1], [0], [0], [1], [0, 0, 1, 1], [], []>} : vector<8x32xbf16>, vector<32x8xbf16>, vector<8x8xf32> -> vector<8x8xf32>
    %31 = vector.broadcast %0 : vector<1x8xf32> to vector<8x8xf32>
    %32 = arith.subf %30, %31 : vector<8x8xf32>
    %cst_16 = arith.constant 2.000000e-01 : f32
    %33 = vector.broadcast %cst_16 : f32 to vector<8x8xf32>
    %34 = arith.addf %32, %33 : vector<8x8xf32>
    %cst_17 = arith.constant 0.000000e+00 : f32
    %35 = vector.broadcast %cst_17 : f32 to vector<8x8xf32>
    %36 = arith.maximumf %34, %35 : vector<8x8xf32>
    %cst_18 = arith.constant 1.000000e+01 : f32
    %37 = vector.broadcast %cst_18 : f32 to vector<8x8xf32>
    %38 = arith.mulf %36, %37 : vector<8x8xf32>
    %cst_19 = arith.constant dense<0xFF800000> : vector<8xf32>
    %39 = vector.multi_reduction <maximumf>, %38, %cst_19 [1] : vector<8x8xf32> to vector<8xf32>
    %40 = vector.shape_cast %39 : vector<8xf32> to vector<8x1xf32>
    %41 = vector.broadcast %40 : vector<8x1xf32> to vector<8x8xf32>
    %42 = arith.subf %38, %41 : vector<8x8xf32>
    %43 = math.exp %42 : vector<8x8xf32>
    %44 = math.sqrt %43 : vector<8x8xf32>
    %45 = arith.mulf %43, %44 : vector<8x8xf32>
    %46 = arith.mulf %45, %36 : vector<8x8xf32>
    %cst_20 = arith.constant dense<0.000000e+00> : vector<8xf32>
    %47 = vector.multi_reduction <add>, %46, %cst_20 [1] : vector<8x8xf32> to vector<8xf32>
    %48 = vector.shape_cast %47 : vector<8xf32> to vector<8x1xf32>
    %cst_21 = arith.constant dense<0.000000e+00> : vector<8xf32>
    %49 = vector.multi_reduction <add>, %43, %cst_21 [1] : vector<8x8xf32> to vector<8xf32>
    %50 = vector.shape_cast %49 : vector<8xf32> to vector<8x1xf32>
    %51 = tpu.reciprocal %50 {approx = true} : vector<8x1xf32> -> vector<8x1xf32>
    %52 = math.rsqrt %50 : vector<8x1xf32>
    %53 = arith.mulf %51, %52 : vector<8x1xf32>
    %54 = arith.mulf %48, %53 : vector<8x1xf32>
    %55 = arith.addf %27, %54 : vector<8x1xf32>
    %56 = vector.shape_cast %55 : vector<8x1xf32> to vector<1x8x1xf32>
    %cst_22 = arith.constant dense<0.000000e+00> : vector<1xf32>
    %57 = vector.multi_reduction <add>, %56, %cst_22 [1, 2] : vector<1x8x1xf32> to vector<1xf32>
    %58 = vector.shape_cast %57 : vector<1xf32> to vector<1x1x1xf32>
    %59 = vector.extract %58[0, 0, 0] : f32 from vector<1x1x1xf32>
    %c0_23 = arith.constant 0 : index
    %c0_24 = arith.constant 0 : index
    %60 = memref.load %arg6[%c0_23, %c0_24] : memref<1x1xf32, #tpu.memory_space<smem>>
    memref.store %59, %arg6[%c0_23, %c0_24] : memref<1x1xf32, #tpu.memory_space<smem>>
    return
  }
  func.func @transform_0(%arg0: i32) -> (i32, i32) {
    %c0_i32 = arith.constant 0 : i32
    %c0_i32_0 = arith.constant 0 : i32
    return %arg0, %c0_i32 : i32, i32
  }
  func.func @transform_1(%arg0: i32) -> (i32, i32) {
    %c0_i32 = arith.constant 0 : i32
    %c0_i32_0 = arith.constant 0 : i32
    return %arg0, %c0_i32 : i32, i32
  }
  func.func @transform_2(%arg0: i32) -> (i32, i32) {
    %c0_i32 = arith.constant 0 : i32
    %c0_i32_0 = arith.constant 0 : i32
    %c0_i32_1 = arith.constant 0 : i32
    return %c0_i32, %c0_i32_0 : i32, i32
  }
  func.func @transform_3(%arg0: i32) -> (i32, i32) {
    %c0_i32 = arith.constant 0 : i32
    %c0_i32_0 = arith.constant 0 : i32
    %c0_i32_1 = arith.constant 0 : i32
    return %c0_i32, %c0_i32_0 : i32, i32
  }
  func.func @transform_4(%arg0: i32) -> (i32, i32) {
    %c0_i32 = arith.constant 0 : i32
    %c0_i32_0 = arith.constant 0 : i32
    %c0_i32_1 = arith.constant 0 : i32
    return %c0_i32, %c0_i32_0 : i32, i32
  }
  func.func @transform_5(%arg0: i32) -> (i32, i32) {
    %c0_i32 = arith.constant 0 : i32
    %c0_i32_0 = arith.constant 0 : i32
    return %arg0, %c0_i32 : i32, i32
  }
}

</mosaic_0001>

<llo_original>
// kernel: tpu_custom_call.1
$region0: #{tpu_custom_call.1}
  #allocation0 [shape = 'u32[]', space=smem, size = 0x4, offset = 0x4, fixed_abs, tag = 'smem constant byte address 0x4 - core index']
  #allocation1 [shape = 'u32[144,128]{1,0:T(1,128)}', space=vmem, size = 0x12000, scoped, tag = 'internal scratch']
  %s0 = inlined_call_operand.vmem [shape: bf16[8,32], index: 0, kind: input, shape index: {}]
  %s1 = inlined_call_operand.vmem [shape: bf16[8,32], index: 1, kind: input, shape index: {}]
  %s2 = inlined_call_operand.vmem [shape: bf16[32,8], index: 2, kind: input, shape index: {}]
  %s3 = inlined_call_operand.vmem [shape: bf16[32,8], index: 3, kind: input, shape index: {}]
  %s4 = inlined_call_operand.vmem [shape: f32[1,8], index: 4, kind: input, shape index: {}]
  %s5 = inlined_call_operand.hbm [shape: f32[1,1], index: 5, kind: output, shape index: {}]
  %s6 = sld [smem:[#allocation0]]
  $region30: #{tpu_custom_call.1} parent=0
    _
  %s8 = ssub.s32 1, %s6
  %s9 = scalar_select 0, %s8, %s6
  $region1: #{tpu_custom_call.1} parent=0
    #allocation2 [shape = 'u8[512]{0}', space=smem, size = 0x200, scoped, tag = 'output window, operand 0, single buffered']
    #allocation3 [shape = 's32[1]{0}', space=sflag, size = 0x4, scoped, tag = 'scoped memory for tpu_custom_call.1']
    %10 = vsyncpa [#allocation3], 0
    // Predicated region
    $region2: #{tpu_custom_call.1} parent=1 // pred_check
      _
    $region3: #{tpu_custom_call.1} parent=1 // pred_check_branch
      %12 = sbr.rel (0) target = $region5
    $region4: #{tpu_custom_call.1} parent=1 // pred_region
      _
    $region5: #{tpu_custom_call.1} parent=1 // pred_fallthru
      _
    // Predicated region
    $region6: #{tpu_custom_call.1} parent=1 // pred_check
      _
    $region7: #{tpu_custom_call.1} parent=1 // pred_check_branch
      %14 = sbr.rel (0) target = $region9
    $region8: #{tpu_custom_call.1} parent=1 // pred_region
      _
    $region9: #{tpu_custom_call.1} parent=1 // pred_fallthru
      _
    // Predicated region
    $region10: #{tpu_custom_call.1} parent=1 // pred_check
      _
    $region11: #{tpu_custom_call.1} parent=1 // pred_check_branch
      %16 = sbr.rel (0) target = $region13
    $region12: #{tpu_custom_call.1} parent=1 // pred_region
      _
    $region13: #{tpu_custom_call.1} parent=1 // pred_fallthru
      _
    // Predicated region
    $region14: #{tpu_custom_call.1} parent=1 // pred_check
      _
    $region15: #{tpu_custom_call.1} parent=1 // pred_check_branch
      %18 = sbr.rel (0) target = $region17
    $region16: #{tpu_custom_call.1} parent=1 // pred_region
      _
    $region17: #{tpu_custom_call.1} parent=1 // pred_fallthru
      _
    // Predicated region
    $region18: #{tpu_custom_call.1} parent=1 // pred_check
      _
    $region19: #{tpu_custom_call.1} parent=1 // pred_check_branch
      %20 = sbr.rel (0) target = $region21
    $region20: #{tpu_custom_call.1} parent=1 // pred_region
      _
    $region21: #{tpu_custom_call.1} parent=1 // pred_fallthru
      _
    %v22 = vld [vmem:[%s4] sm:$0x1]
    %v23 = vld [vmem:[%s0] sm:$0xf]
    %v24 = vld [vmem:[%s2] sm:$0xf]
    %v25 = vld [vmem:[%s2 + $0x4] sm:$0xf]
    %v26 = vld [vmem:[%s2 + $0x8] sm:$0xf]
    %v27 = vld [vmem:[%s2 + $0xc] sm:$0xf]
    %v32 = vunpack.c.l.b16 %v24
    %v33 = vunpack.c.l.b16 %v25
    %v34 = vunpack.c.l.b16 %v26
    %v35 = vunpack.c.l.b16 %v27
    %v36 = vpack.c.b16 %v33, %v32
    %v37 = vpack.c.b16 %v35, %v34
    %vm40 = vcmask 261120
    %v42 = vsel %vm40, %v23, 0
    %44 = vmatprep.subr.bf16.mxu0 0
    %45 = vmatpush1.bf16.msra.mxu0 0
    %46 = vmatprep.subr.bf16.mxu0 0
    %47 = vmatpush1.bf16.msra.mxu0 0
    %48 = vmatprep.subr.bf16.mxu0 0
    %49 = vmatpush1.bf16.msra.mxu0 0
    %50 = vmatprep.subr.bf16.mxu0 0
    %51 = vmatpush1.bf16.msra.mxu0 0
    %52 = vmatprep.subr.bf16.mxu0 0
    %53 = vmatpush1.bf16.msra.mxu0 0
    %54 = vmatprep.subr.bf16.mxu0 0
    %55 = vmatpush1.bf16.msra.mxu0 0
    %56 = vmatprep.subr.bf16.mxu0 0
    %57 = vmatpush1.bf16.msra.mxu0 %v37
    %58 = vmatprep.subr.bf16.mxu0 0
    %59 = vmatpush1.bf16.msra.mxu0 %v36
    %60 = vmatprep.subr.bf16.mxu0 0
    %61 = vmatpush2.bf16.msra.mxu0 0
    %62 = vmatprep.subr.bf16.mxu0 0
    %63 = vmatpush2.bf16.msra.mxu0 0
    %64 = vmatprep.subr.bf16.mxu0 0
    %65 = vmatpush2.bf16.msra.mxu0 0
    %66 = vmatprep.subr.bf16.mxu0 0
    %67 = vmatpush2.bf16.msra.mxu0 0
    %68 = vmatprep.subr.bf16.mxu0 0
    %69 = vmatpush2.bf16.msra.mxu0 0
    %70 = vmatprep.subr.bf16.mxu0 0
    %71 = vmatpush2.bf16.msra.mxu0 0
    %72 = vmatprep.subr.bf16.mxu0 0
    %73 = vmatpush2.bf16.msra.mxu0 0
    %74 = vmatprep.subr.bf16.mxu0 0
    %75 = vmatpush2.bf16.msra.mxu0 0
    %76 = vmatprep.mubr.bf16.mxu0 0
    %77 = vmatmul.mubr.bf16.gmra.mxu0 %v42
    %v78 = vpop.f32.mrf.mxu0
    %v79 = vadd.f32 0.0, %v78
    %v80 = vpop.f32.mrf.mxu0
    %v81 = vpop.f32.mrf.mxu0
    %v82 = vpop.f32.mrf.mxu0
    %83 = vdwg.mxu0
    %v85 = vlaneseq
    %v86 = vshrl.u32 %v85, 7
    %v87 = vsub.s32 0, %v86
    %v88 = vrot.slane %v22, %v87
    %v90 = vsub.f32 %v79, %v88
    %v91 = vadd.f32 %v90, 0.2
    %v92 = vmax.f32 %v91, 0.0
    %v93 = vmul.f32 %v92, 10.0
    %vm94 = vcmask 64512
    %v95 = vsel %vm94, %v93, -inf
    %96 = vmax.xlane.f32.xlu0 %v95
    %v97 = vpop.xlane.xlu0 %96
    %v98 = vsub.f32 %v93, %v97
    %v99 = vmul.f32 %v98, 1.442695
    %v100 = vpow.pop %v99
    %v101 = vrsqrt.pop %v100
    %v102 = vmul.f32 %v100, %v101
    %vm103 = vcmp.eq.f32.partialorder %v100, inf
    %v104 = vsel %vm103, %v100, %v102
    %vm105 = vcmp.eq.f32.partialorder %v100, 0.0
    %v106 = vand.u32 %v100, 2147483648
    %v107 = vsel %vm105, %v106, %v104
    %v108 = vmul.f32 %v100, %v107
    %v109 = vmul.f32 %v108, %v92
    %v110 = vsel %vm94, %v109, 0.0
    %111 = vadd.xlane.f32.xlu0 %v110
    %v112 = vpop.xlane.xlu0 %111
    %v113 = vsel %vm94, %v100, 0.0
    %114 = vadd.xlane.f32.xlu0 %v113
    %v115 = vpop.xlane.xlu0 %114
    %v116 = vrcp.pop %v115
    %v117 = vrsqrt.pop %v115
    %v118 = vmul.f32 %v116, %v117
    %v119 = vmul.f32 %v112, %v118
    %v120 = vld [vmem:[%s1] sm:$0xf]
    %v121 = vld [vmem:[%s3] sm:$0xf]
    %v122 = vld [vmem:[%s3 + $0x4] sm:$0xf]
    %v123 = vld [vmem:[%s3 + $0x8] sm:$0xf]
    %v124 = vld [vmem:[%s3 + $0xc] sm:$0xf]
    %v129 = vunpack.c.l.b16 %v121
    %v130 = vunpack.c.l.b16 %v122
    %v131 = vunpack.c.l.b16 %v123
    %v132 = vunpack.c.l.b16 %v124
    %v133 = vpack.c.b16 %v130, %v129
    %v134 = vpack.c.b16 %v132, %v131
    %v138 = vsel %vm40, %v120, 0
    %140 = vmatprep.subr.bf16.mxu0 0
    %141 = vmatpush1.bf16.msra.mxu0 0
    %142 = vmatprep.subr.bf16.mxu0 0
    %143 = vmatpush1.bf16.msra.mxu0 0
    %144 = vmatprep.subr.bf16.mxu0 0
    %145 = vmatpush1.bf16.msra.mxu0 0
    %146 = vmatprep.subr.bf16.mxu0 0
    %147 = vmatpush1.bf16.msra.mxu0 0
    %148 = vmatprep.subr.bf16.mxu0 0
    %149 = vmatpush1.bf16.msra.mxu0 0
    %150 = vmatprep.subr.bf16.mxu0 0
    %151 = vmatpush1.bf16.msra.mxu0 0
    %152 = vmatprep.subr.bf16.mxu0 0
    %153 = vmatpush1.bf16.msra.mxu0 %v134
    %154 = vmatprep.subr.bf16.mxu0 0
    %155 = vmatpush1.bf16.msra.mxu0 %v133
    %156 = vmatprep.subr.bf16.mxu0 0
    %157 = vmatpush2.bf16.msra.mxu0 0
    %158 = vmatprep.subr.bf16.mxu0 0
    %159 = vmatpush2.bf16.msra.mxu0 0
    %160 = vmatprep.subr.bf16.mxu0 0
    %161 = vmatpush2.bf16.msra.mxu0 0
    %162 = vmatprep.subr.bf16.mxu0 0
    %163 = vmatpush2.bf16.msra.mxu0 0
    %164 = vmatprep.subr.bf16.mxu0 0
    %165 = vmatpush2.bf16.msra.mxu0 0
    %166 = vmatprep.subr.bf16.mxu0 0
    %167 = vmatpush2.bf16.msra.mxu0 0
    %168 = vmatprep.subr.bf16.mxu0 0
    %169 = vmatpush2.bf16.msra.mxu0 0
    %170 = vmatprep.subr.bf16.mxu0 0
    %171 = vmatpush2.bf16.msra.mxu0 0
    %172 = vmatprep.mubr.bf16.mxu0 0
    %173 = vmatmul.mubr.bf16.gmra.mxu0 %v138
    %v174 = vpop.f32.mrf.mxu0
    %v175 = vadd.f32 0.0, %v174
    %v176 = vpop.f32.mrf.mxu0
    %v177 = vpop.f32.mrf.mxu0
    %v178 = vpop.f32.mrf.mxu0
    %179 = vdwg.mxu0
    %v180 = vsub.f32 %v175, %v88
    %v181 = vadd.f32 %v180, 0.2
    %v182 = vmax.f32 %v181, 0.0
    %v183 = vmul.f32 %v182, 10.0
    %v184 = vsel %vm94, %v183, -inf
    %185 = vmax.xlane.f32.xlu0 %v184
    %v186 = vpop.xlane.xlu0 %185
    %v187 = vsub.f32 %v183, %v186
    %v188 = vmul.f32 %v187, 1.442695
    %v189 = vpow.pop %v188
    %v190 = vrsqrt.pop %v189
    %v191 = vmul.f32 %v189, %v190
    %vm192 = vcmp.eq.f32.partialorder %v189, inf
    %v193 = vsel %vm192, %v189, %v191
    %vm194 = vcmp.eq.f32.partialorder %v189, 0.0
    %v195 = vand.u32 %v189, 2147483648
    %v196 = vsel %vm194, %v195, %v193
    %v197 = vmul.f32 %v189, %v196
    %v198 = vmul.f32 %v197, %v182
    %v199 = vsel %vm94, %v198, 0.0
    %200 = vadd.xlane.f32.xlu0 %v199
    %v201 = vpop.xlane.xlu0 %200
    %v202 = vsel %vm94, %v189, 0.0
    %203 = vadd.xlane.f32.xlu0 %v202
    %v204 = vpop.xlane.xlu0 %203
    %v205 = vrcp.pop %v204
    %v206 = vrsqrt.pop %v204
    %v207 = vmul.f32 %v205, %v206
    %v208 = vmul.f32 %v201, %v207
    %v209 = vadd.f32 %v119, %v208
    %vm210 = vcmask 7168
    %v211 = vsel %vm210, %v209, 0.0
    %212 = vadd.xlane.f32.xlu0 %v211
    %v213 = vpop.xlane.xlu0 %212
    %v214 = vrot.slane %v213, 4
    %v215 = vadd.f32 %v213, %v214
    %v216 = vrot.slane %v215, 2
    %v217 = vadd.f32 %v215, %v216
    %v218 = vrot.slane %v217, 1
    %v219 = vadd.f32 %v217, %v218
    %s220 = vtos %v219
    %s221 = scalar_lea.smem [#allocation2], 0
    %222 = sst [smem:[%s221]] %s220
    // Predicated region
    $region22: #{tpu_custom_call.1} parent=1 // pred_check
      _
    $region23: #{tpu_custom_call.1} parent=1 // pred_check_branch
      %224 = sbr.rel (0) target = $region25
    $region24: #{tpu_custom_call.1} parent=1 // pred_region
      %s226 = ssub.s32 16, 16
      %227 = vsyncadd [#allocation3], %s226
      %230 = dma.smem_to_hbm [#allocation2], 16, %s5, [#allocation3]
    $region25: #{tpu_custom_call.1} parent=1 // pred_fallthru
      _
    // Predicated region
    $region26: #{tpu_custom_call.1} parent=1 // pred_check
      _
    $region27: #{tpu_custom_call.1} parent=1 // pred_check_branch
      %232 = sbr.rel (0) target = $region29
    $region28: #{tpu_custom_call.1} parent=1 // pred_region
      %233 = dma.done [#allocation3], 16
    $region29: #{tpu_custom_call.1} parent=1 // pred_fallthru
      _
    %234 = sfence
    %235 = vsyncpa [#allocation3], 1

// kernel: tpu_custom_call.1
$region0: #{tpu_custom_call.1}
  #allocation0 [shape = 'u32[]', space=smem, size = 0x4, offset = 0x4, fixed_abs, tag = 'smem constant byte address 0x4 - core index']
  #allocation1 [shape = 'u32[144,128]{1,0:T(1,128)}', space=vmem, size = 0x12000, scoped, tag = 'internal scratch']
  %s0 = inlined_call_operand.vmem [shape: bf16[8,32], index: 0, kind: input, shape index: {}]
  %s1 = inlined_call_operand.vmem [shape: bf16[8,32], index: 1, kind: input, shape index: {}]
  %s2 = inlined_call_operand.vmem [shape: bf16[32,8], index: 2, kind: input, shape index: {}]
  %s3 = inlined_call_operand.vmem [shape: bf16[32,8], index: 3, kind: input, shape index: {}]
  %s4 = inlined_call_operand.vmem [shape: f32[1,8], index: 4, kind: input, shape index: {}]
  %s5 = inlined_call_operand.hbm [shape: f32[1,1], index: 5, kind: output, shape index: {}]
  %s6 = sld [smem:[#allocation0]]
  $region30: #{tpu_custom_call.1} parent=0
    _
  %s8 = ssub.s32 1, %s6
  %s9 = scalar_select 0, %s8, %s6
  $region1: #{tpu_custom_call.1} parent=0
    #allocation2 [shape = 'u8[512]{0}', space=smem, size = 0x200, scoped, tag = 'output window, operand 0, single buffered']
    #allocation3 [shape = 's32[1]{0}', space=sflag, size = 0x4, scoped, tag = 'scoped memory for tpu_custom_call.1']
    %10 = vsyncpa [#allocation3], 0
    // Predicated region
    $region2: #{tpu_custom_call.1} parent=1 // pred_check
      _
    $region3: #{tpu_custom_call.1} parent=1 // pred_check_branch
      %12 = sbr.rel (0) target = $region5
    $region4: #{tpu_custom_call.1} parent=1 // pred_region
      _
    $region5: #{tpu_custom_call.1} parent=1 // pred_fallthru
      _
    // Predicated region
    $region6: #{tpu_custom_call.1} parent=1 // pred_check
      _
    $region7: #{tpu_custom_call.1} parent=1 // pred_check_branch
      %14 = sbr.rel (0) target = $region9
    $region8: #{tpu_custom_call.1} parent=1 // pred_region
      _
    $region9: #{tpu_custom_call.1} parent=1 // pred_fallthru
      _
    // Predicated region
    $region10: #{tpu_custom_call.1} parent=1 // pred_check
      _
    $region11: #{tpu_custom_call.1} parent=1 // pred_check_branch
      %16 = sbr.rel (0) target = $region13
    $region12: #{tpu_custom_call.1} parent=1 // pred_region
      _
    $region13: #{tpu_custom_call.1} parent=1 // pred_fallthru
      _
    // Predicated region
    $region14: #{tpu_custom_call.1} parent=1 // pred_check
      _
    $region15: #{tpu_custom_call.1} parent=1 // pred_check_branch
      %18 = sbr.rel (0) target = $region17
    $region16: #{tpu_custom_call.1} parent=1 // pred_region
      _
    $region17: #{tpu_custom_call.1} parent=1 // pred_fallthru
      _
    // Predicated region
    $region18: #{tpu_custom_call.1} parent=1 // pred_check
      _
    $region19: #{tpu_custom_call.1} parent=1 // pred_check_branch
      %20 = sbr.rel (0) target = $region21
    $region20: #{tpu_custom_call.1} parent=1 // pred_region
      _
    $region21: #{tpu_custom_call.1} parent=1 // pred_fallthru
      _
    %v22 = vld [vmem:[%s4] sm:$0x1]
    %v23 = vld [vmem:[%s0] sm:$0xf]
    %v24 = vld [vmem:[%s2] sm:$0xf]
    %v25 = vld [vmem:[%s2 + $0x4] sm:$0xf]
    %v26 = vld [vmem:[%s2 + $0x8] sm:$0xf]
    %v27 = vld [vmem:[%s2 + $0xc] sm:$0xf]
    %v32 = vunpack.c.l.b16 %v24
    %v33 = vunpack.c.l.b16 %v25
    %v34 = vunpack.c.l.b16 %v26
    %v35 = vunpack.c.l.b16 %v27
    %v36 = vpack.c.b16 %v33, %v32
    %v37 = vpack.c.b16 %v35, %v34
    %vm40 = vcmask 261120
    %v42 = vsel %vm40, %v23, 0
    %44 = vmatprep.subr.bf16.mxu0 0
    %45 = vmatpush1.bf16.msra.mxu0 0
    %46 = vmatprep.subr.bf16.mxu0 0
    %47 = vmatpush1.bf16.msra.mxu0 0
    %48 = vmatprep.subr.bf16.mxu0 0
    %49 = vmatpush1.bf16.msra.mxu0 0
    %50 = vmatprep.subr.bf16.mxu0 0
    %51 = vmatpush1.bf16.msra.mxu0 0
    %52 = vmatprep.subr.bf16.mxu0 0
    %53 = vmatpush1.bf16.msra.mxu0 0
    %54 = vmatprep.subr.bf16.mxu0 0
    %55 = vmatpush1.bf16.msra.mxu0 0
    %56 = vmatprep.subr.bf16.mxu0 0
    %57 = vmatpush1.bf16.msra.mxu0 %v37
    %58 = vmatprep.subr.bf16.mxu0 0
    %59 = vmatpush1.bf16.msra.mxu0 %v36
    %60 = vmatprep.subr.bf16.mxu0 0
    %61 = vmatpush2.bf16.msra.mxu0 0
    %62 = vmatprep.subr.bf16.mxu0 0
    %63 = vmatpush2.bf16.msra.mxu0 0
    %64 = vmatprep.subr.bf16.mxu0 0
    %65 = vmatpush2.bf16.msra.mxu0 0
    %66 = vmatprep.subr.bf16.mxu0 0
    %67 = vmatpush2.bf16.msra.mxu0 0
    %68 = vmatprep.subr.bf16.mxu0 0
    %69 = vmatpush2.bf16.msra.mxu0 0
    %70 = vmatprep.subr.bf16.mxu0 0
    %71 = vmatpush2.bf16.msra.mxu0 0
    %72 = vmatprep.subr.bf16.mxu0 0
    %73 = vmatpush2.bf16.msra.mxu0 0
    %74 = vmatprep.subr.bf16.mxu0 0
    %75 = vmatpush2.bf16.msra.mxu0 0
    %76 = vmatprep.mubr.bf16.mxu0 0
    %77 = vmatmul.mubr.bf16.gmra.mxu0 %v42
    %v78 = vpop.f32.mrf.mxu0
    %v79 = vadd.f32 0.0, %v78
    %v80 = vpop.f32.mrf.mxu0
    %v81 = vpop.f32.mrf.mxu0
    %v82 = vpop.f32.mrf.mxu0
    %83 = vdwg.mxu0
    %v85 = vlaneseq
    %v86 = vshrl.u32 %v85, 7
    %v87 = vsub.s32 0, %v86
    %v88 = vrot.slane %v22, %v87
    %v90 = vsub.f32 %v79, %v88
    %v91 = vadd.f32 %v90, 0.2
    %v92 = vmax.f32 %v91, 0.0
    %v93 = vmul.f32 %v92, 10.0
    %vm94 = vcmask 64512
    %v95 = vsel %vm94, %v93, -inf
    %96 = vmax.xlane.f32.xlu0 %v95
    %v97 = vpop.xlane.xlu0 %96
    %v98 = vsub.f32 %v93, %v97
    %v99 = vmul.f32 %v98, 1.442695
    %v100 = vpow.pop %v99
    %v101 = vrsqrt.pop %v100
    %v102 = vmul.f32 %v100, %v101
    %vm103 = vcmp.eq.f32.partialorder %v100, inf
    %v104 = vsel %vm103, %v100, %v102
    %vm105 = vcmp.eq.f32.partialorder %v100, 0.0
    %v106 = vand.u32 %v100, 2147483648
    %v107 = vsel %vm105, %v106, %v104
    %v108 = vmul.f32 %v100, %v107
    %v109 = vmul.f32 %v108, %v92
    %v110 = vsel %vm94, %v109, 0.0
    %111 = vadd.xlane.f32.xlu0 %v110
    %v112 = vpop.xlane.xlu0 %111
    %v113 = vsel %vm94, %v100, 0.0
    %114 = vadd.xlane.f32.xlu0 %v113
    %v115 = vpop.xlane.xlu0 %114
    %v116 = vrcp.pop %v115
    %v117 = vrsqrt.pop %v115
    %v118 = vmul.f32 %v116, %v117
    %v119 = vmul.f32 %v112, %v118
    %v120 = vld [vmem:[%s1] sm:$0xf]
    %v121 = vld [vmem:[%s3] sm:$0xf]
    %v122 = vld [vmem:[%s3 + $0x4] sm:$0xf]
    %v123 = vld [vmem:[%s3 + $0x8] sm:$0xf]
    %v124 = vld [vmem:[%s3 + $0xc] sm:$0xf]
    %v129 = vunpack.c.l.b16 %v121
    %v130 = vunpack.c.l.b16 %v122
    %v131 = vunpack.c.l.b16 %v123
    %v132 = vunpack.c.l.b16 %v124
    %v133 = vpack.c.b16 %v130, %v129
    %v134 = vpack.c.b16 %v132, %v131
    %v138 = vsel %vm40, %v120, 0
    %140 = vmatprep.subr.bf16.mxu0 0
    %141 = vmatpush1.bf16.msra.mxu0 0
    %142 = vmatprep.subr.bf16.mxu0 0
    %143 = vmatpush1.bf16.msra.mxu0 0
    %144 = vmatprep.subr.bf16.mxu0 0
    %145 = vmatpush1.bf16.msra.mxu0 0
    %146 = vmatprep.subr.bf16.mxu0 0
    %147 = vmatpush1.bf16.msra.mxu0 0
    %148 = vmatprep.subr.bf16.mxu0 0
    %149 = vmatpush1.bf16.msra.mxu0 0
    %150 = vmatprep.subr.bf16.mxu0 0
    %151 = vmatpush1.bf16.msra.mxu0 0
    %152 = vmatprep.subr.bf16.mxu0 0
    %153 = vmatpush1.bf16.msra.mxu0 %v134
    %154 = vmatprep.subr.bf16.mxu0 0
    %155 = vmatpush1.bf16.msra.mxu0 %v133
    %156 = vmatprep.subr.bf16.mxu0 0
    %157 = vmatpush2.bf16.msra.mxu0 0
    %158 = vmatprep.subr.bf16.mxu0 0
    %159 = vmatpush2.bf16.msra.mxu0 0
    %160 = vmatprep.subr.bf16.mxu0 0
    %161 = vmatpush2.bf16.msra.mxu0 0
    %162 = vmatprep.subr.bf16.mxu0 0
    %163 = vmatpush2.bf16.msra.mxu0 0
    %164 = vmatprep.subr.bf16.mxu0 0
    %165 = vmatpush2.bf16.msra.mxu0 0
    %166 = vmatprep.subr.bf16.mxu0 0
    %167 = vmatpush2.bf16.msra.mxu0 0
    %168 = vmatprep.subr.bf16.mxu0 0
    %169 = vmatpush2.bf16.msra.mxu0 0
    %170 = vmatprep.subr.bf16.mxu0 0
    %171 = vmatpush2.bf16.msra.mxu0 0
    %172 = vmatprep.mubr.bf16.mxu0 0
    %173 = vmatmul.mubr.bf16.gmra.mxu0 %v138
    %v174 = vpop.f32.mrf.mxu0
    %v175 = vadd.f32 0.0, %v174
    %v176 = vpop.f32.mrf.mxu0
    %v177 = vpop.f32.mrf.mxu0
    %v178 = vpop.f32.mrf.mxu0
    %179 = vdwg.mxu0
    %v180 = vsub.f32 %v175, %v88
    %v181 = vadd.f32 %v180, 0.2
    %v182 = vmax.f32 %v181, 0.0
    %v183 = vmul.f32 %v182, 10.0
    %v184 = vsel %vm94, %v183, -inf
    %185 = vmax.xlane.f32.xlu0 %v184
    %v186 = vpop.xlane.xlu0 %185
    %v187 = vsub.f32 %v183, %v186
    %v188 = vmul.f32 %v187, 1.442695
    %v189 = vpow.pop %v188
    %v190 = vrsqrt.pop %v189
    %v191 = vmul.f32 %v189, %v190
    %vm192 = vcmp.eq.f32.partialorder %v189, inf
    %v193 = vsel %vm192, %v189, %v191
    %vm194 = vcmp.eq.f32.partialorder %v189, 0.0
    %v195 = vand.u32 %v189, 2147483648
    %v196 = vsel %vm194, %v195, %v193
    %v197 = vmul.f32 %v189, %v196
    %v198 = vmul.f32 %v197, %v182
    %v199 = vsel %vm94, %v198, 0.0
    %200 = vadd.xlane.f32.xlu0 %v199
    %v201 = vpop.xlane.xlu0 %200
    %v202 = vsel %vm94, %v189, 0.0
    %203 = vadd.xlane.f32.xlu0 %v202
    %v204 = vpop.xlane.xlu0 %203
    %v205 = vrcp.pop %v204
    %v206 = vrsqrt.pop %v204
    %v207 = vmul.f32 %v205, %v206
    %v208 = vmul.f32 %v201, %v207
    %v209 = vadd.f32 %v119, %v208
    %vm210 = vcmask 7168
    %v211 = vsel %vm210, %v209, 0.0
    %212 = vadd.xlane.f32.xlu0 %v211
    %v213 = vpop.xlane.xlu0 %212
    %v214 = vrot.slane %v213, 4
    %v215 = vadd.f32 %v213, %v214
    %v216 = vrot.slane %v215, 2
    %v217 = vadd.f32 %v215, %v216
    %v218 = vrot.slane %v217, 1
    %v219 = vadd.f32 %v217, %v218
    %s220 = vtos %v219
    %s221 = scalar_lea.smem [#allocation2], 0
    %222 = sst [smem:[%s221]] %s220
    // Predicated region
    $region22: #{tpu_custom_call.1} parent=1 // pred_check
      _
    $region23: #{tpu_custom_call.1} parent=1 // pred_check_branch
      %224 = sbr.rel (0) target = $region25
    $region24: #{tpu_custom_call.1} parent=1 // pred_region
      %s226 = ssub.s32 16, 16
      %227 = vsyncadd [#allocation3], %s226
      %230 = dma.smem_to_hbm [#allocation2], 16, %s5, [#allocation3]
    $region25: #{tpu_custom_call.1} parent=1 // pred_fallthru
      _
    // Predicated region
    $region26: #{tpu_custom_call.1} parent=1 // pred_check
      _
    $region27: #{tpu_custom_call.1} parent=1 // pred_check_branch
      %232 = sbr.rel (0) target = $region29
    $region28: #{tpu_custom_call.1} parent=1 // pred_region
      %233 = dma.done [#allocation3], 16
    $region29: #{tpu_custom_call.1} parent=1 // pred_fallthru
      _
    %234 = sfence
    %235 = vsyncpa [#allocation3], 1

</llo_original>
